<compile_context>
chip_gen: v7x
topology: tpu7x:2x2x1
jax: 0.10.0
libtpu: 0.0.40
codegen_flags: <defaults>
</compile_context>

<pallas_src>
import math
from functools import partial

import jax
import jax.numpy as jnp
from jax.experimental import pallas as pl
from jax.experimental.pallas import tpu as pltpu


# ----------------------------------------------------------------------------
# qaintum_qe helper: choose QNN hyper-parameters from the task
# ----------------------------------------------------------------------------
def determine_qnn_parameters(task_type, num_classes=None):
    if task_type == "classification":
        cutoff_dim = 2
        num_wires = max(2, int(math.ceil(math.log2(max(int(num_classes), 2)))))
        output_size = cutoff_dim ** num_wires          # Fock-basis readout size
    else:  # regression
        cutoff_dim = 2
        num_wires = 4
        output_size = 1
    return {"cutoff_dim": cutoff_dim, "num_wires": num_wires,
            "output_size": output_size}


def _round_up(x, n):
    return ((x + n - 1) // n) * n


# ----------------------------------------------------------------------------
# Packed-parameter layout (single VMEM buffer, 8-row-aligned sections):
#   rows [0, F)                       cols [0, m) : wenc            (F, m)
#   rows [r_w + l*m_pad, +m)          cols [0, m) : W_l = u1 e^s u2 (m, m)
#   rows [r_out, +m)                  cols [0, O) : wout            (m, O)
#   row  r_bias                       cols [0, m) : benc
#   rows r_bias + 1 + l               cols [0, m) : bd_l
# ----------------------------------------------------------------------------
def _pack_layout(in_features, num_wires, output_size, num_layers):
    f_pad = _round_up(in_features, 8)
    m_pad = _round_up(num_wires, 8)
    r_w = f_pad
    r_out = r_w + num_layers * m_pad
    r_bias = r_out + m_pad
    rows = r_bias + 1 + num_layers
    cols = max(num_wires, output_size)
    return {"r_w": r_w, "r_out": r_out, "r_bias": r_bias,
            "m_pad": m_pad, "rows": rows, "cols": cols}


# ----------------------------------------------------------------------------
# Pallas kernel: encode -> folded CV layers -> readout.
#   x_ref  : (TILE_B, in_features) f32   (batch tile on sublanes)
#   pk_ref : (R, C) f32 packed params    (resident in VMEM across the grid)
#   o_ref  : (TILE_B, output_size) f32
# ----------------------------------------------------------------------------
def _qnn_kernel(x_ref, pk_ref, o_ref, *, num_layers, num_wires, in_features,
                output_size, normalize_inputs, layout):
    m, F, L, O = num_wires, in_features, num_layers, output_size
    r_w, r_out, r_bias = layout["r_w"], layout["r_out"], layout["r_bias"]
    m_pad = layout["m_pad"]

    x = x_ref[...].astype(jnp.float32)                        # (TILE_B, F)
    if normalize_inputs:
        inv = jax.lax.rsqrt(jnp.sum(x * x, axis=1, keepdims=True) + 1e-12)
        x = x * inv

    # displacement-style input encoding onto the num_wires quadrature surrogate
    wenc = pk_ref[0:F, 0:m]                                   # (F, m)
    benc = pk_ref[r_bias:r_bias + 1, 0:m]                     # (1, m)
    h = jnp.tanh(jnp.dot(x, wenc, preferred_element_type=jnp.float32) + benc)

    # each CV layer: (interferometer, squeeze, interferometer) pre-folded into
    # one matrix W_l = u1 @ diag(exp(s)) @ u2; displacement is the bias bd_l.
    for l in range(L):                                        # static unroll (2)
        r0 = r_w + l * m_pad
        W = pk_ref[r0:r0 + m, 0:m]                            # (m, m)
        bd = pk_ref[r_bias + 1 + l:r_bias + 2 + l, 0:m]       # (1, m)
        # TODO(synk): Kerr gate acts in Fock space; tanh is its classical surrogate.
        h = jnp.tanh(jnp.dot(h, W, preferred_element_type=jnp.float32) + bd)

    # measurement readout: num_wires -> output_size pseudo-expectations
    wout = pk_ref[r_out:r_out + m, 0:O]                       # (m, O)
    o_ref[...] = jnp.dot(h, wout,
                         preferred_element_type=jnp.float32).astype(o_ref.dtype)


def quantum_neural_network_forward(x, packed, *, num_wires, in_features,
                                   output_size, num_layers, normalize_inputs,
                                   max_tile_b=2048):
    B = x.shape[0]
    tile_b = min(max_tile_b, _round_up(max(B, 1), 8))
    Bp = _round_up(B, tile_b)

    xp = x.astype(jnp.float32)
    if Bp != B:   # zero-pad only when needed (tiny / absent for aligned batches)
        xp = jnp.zeros((Bp, in_features), jnp.float32).at[:B, :].set(xp)

    layout = _pack_layout(in_features, num_wires, output_size, num_layers)
    kernel = partial(_qnn_kernel, num_layers=num_layers, num_wires=num_wires,
                     in_features=in_features, output_size=output_size,
                     normalize_inputs=normalize_inputs, layout=layout)

    out = pl.pallas_call(
        kernel,
        out_shape=jax.ShapeDtypeStruct((Bp, output_size), jnp.float32),
        grid=(Bp // tile_b,),
        in_specs=[
            pl.BlockSpec((tile_b, in_features), lambda i: (i, 0)),
            pl.BlockSpec(packed.shape, lambda i: (0, 0)),     # params stay resident
        ],
        out_specs=pl.BlockSpec((tile_b, output_size), lambda i: (i, 0)),
        compiler_params=pltpu.CompilerParams(
            dimension_semantics=("parallel",)),               # megacore-shardable
    )(xp, packed)

    return out[:B] if Bp != B else out                        # (B, output_size) f32


# ----------------------------------------------------------------------------
# Parameter init (active_sd for squeeze/displace, passive_sd for
# interferometers, mirroring init_method='normal') + algebraic folding +
# packing into the single VMEM buffer described above.
# ----------------------------------------------------------------------------
def init_qnn_params(key, in_features, num_wires, output_size, num_layers=2,
                    active_sd=1e-4, passive_sd=0.1, gain=1.0):
    ks = jax.random.split(key, 7)
    m, F, L, O = num_wires, in_features, num_layers, output_size
    eye = jnp.eye(m, dtype=jnp.float32)

    wenc = gain * passive_sd * jax.random.normal(ks[0], (F, m), jnp.float32)
    benc = active_sd * jax.random.normal(ks[1], (m,), jnp.float32)
    u1 = eye + passive_sd * jax.random.normal(ks[2], (L, m, m), jnp.float32)
    s = active_sd * jax.random.normal(ks[3], (L, m), jnp.float32)
    u2 = eye + passive_sd * jax.random.normal(ks[4], (L, m, m), jnp.float32)
    bd = active_sd * jax.random.normal(ks[5], (L, m), jnp.float32)
    wout = passive_sd * jax.random.normal(ks[6], (m, O), jnp.float32)

    # exact fold: W_l[i,k] = sum_j u1[l,i,j] * exp(s[l,j]) * u2[l,j,k]
    W = jnp.einsum("lij,lj,ljk->lik", u1, jnp.exp(s), u2)

    lay = _pack_layout(F, m, O, L)
    pk = jnp.zeros((lay["rows"], lay["cols"]), jnp.float32)
    pk = pk.at[0:F, 0:m].set(wenc)
    for l in range(L):
        r0 = lay["r_w"] + l * lay["m_pad"]
        pk = pk.at[r0:r0 + m, 0:m].set(W[l])
    pk = pk.at[lay["r_out"]:lay["r_out"] + m, 0:O].set(wout)
    pk = pk.at[lay["r_bias"], 0:m].set(benc)
    for l in range(L):
        pk = pk.at[lay["r_bias"] + 1 + l, 0:m].set(bd[l])
    return pk


# ----------------------------------------------------------------------------
# QuantumFeedForward wrapper (exact forward semantics of the PyTorch module)
# ----------------------------------------------------------------------------
class QuantumFeedForward:
    def __init__(self, task_type, num_classes=None, *, key, in_features,
                 init_method="normal", active_sd=1e-4, passive_sd=0.1, gain=1.0,
                 normalize_inputs=True, dropout_rate=0.0):
        if task_type not in ("classification", "regression"):
            raise ValueError(f"Unsupported task type: {task_type}")
        if task_type == "classification" and num_classes is None:
            raise ValueError("num_classes must be provided for classification tasks.")
        self.task_type = task_type
        self.num_classes = num_classes
        p = determine_qnn_parameters(task_type=task_type, num_classes=num_classes)
        self.cutoff_dim = p["cutoff_dim"]
        self.num_wires = p["num_wires"]
        self.output_size = p["output_size"]
        self.num_layers = 2
        self.in_features = in_features
        self.normalize_inputs = normalize_inputs
        # dropout_rate == 0.0 -> inference no-op (not emitted in the kernel)
        self.packed = init_qnn_params(key, in_features, self.num_wires,
                                      self.output_size, self.num_layers,
                                      active_sd, passive_sd, gain)

    def __call__(self, inputs):
        quantum_output = quantum_neural_network_forward(
            inputs, self.packed, num_wires=self.num_wires,
            in_features=self.in_features, output_size=self.output_size,
            num_layers=self.num_layers, normalize_inputs=self.normalize_inputs)
        batch_size = inputs.shape[0]
        if self.task_type == "classification":
            required_size = batch_size * self.num_classes
            if quantum_output.size < required_size:
                raise ValueError(
                    f"Quantum output size ({quantum_output.size}) is smaller "
                    f"than the required size ({required_size}).")
            # exact PyTorch semantics: flatten()[:required].view(B, num_classes)
            # (note: rows share trailing readout elements when output_size !=
            #  num_classes — mirrors the original module verbatim)
            return jnp.reshape(jnp.ravel(quantum_output)[:required_size],
                               (batch_size, self.num_classes))
        return quantum_output


if __name__ == "__main__":
    key = jax.random.PRNGKey(0)
    k_x, k_p, k_p2 = jax.random.split(key, 3)

    batch, in_features, num_classes = 2, 32, 10
    x = jax.random.normal(k_x, (batch, in_features), jnp.float32)

    # classification path
    clf = QuantumFeedForward("classification", num_classes=num_classes,
                             key=k_p, in_features=in_features)
    out_c = clf(x)
    jax.block_until_ready(out_c)
    assert out_c.shape == (batch, num_classes), out_c.shape
    assert bool(jnp.all(jnp.isfinite(out_c)))

    # regression path (output_size = 1)
    reg = QuantumFeedForward("regression", key=k_p2, in_features=in_features)
    out_r = reg(x)
    jax.block_until_ready(out_r)
    assert out_r.shape == (batch, 1), out_r.shape
    assert bool(jnp.all(jnp.isfinite(out_r)))

    print("KERNEL_OK")
</pallas_src>

<mosaic_0001>
module attributes {stable_mosaic.version = 11 : i64} {
  func.func @_qnn_kernel(%arg0: i32, %arg1: memref<8x32xf32, #tpu.memory_space<vmem>>, %arg2: memref<59x16xf32, #tpu.memory_space<vmem>>, %arg3: memref<8x16xf32, #tpu.memory_space<vmem>>) attributes {dimension_semantics = [#tpu.dimension_semantics<parallel>], iteration_bounds = array<i64: 1>, scalar_prefetch = 0 : i64, scratch_operands = 0 : i64, tpu.core_type = #tpu.core_type<tc>, window_params = [{transform_indices = @transform_0, window_bounds = array<i64: 8, 32>}, {pipeline_mode = #tpu.pipeline_mode<synchronous>, transform_indices = @transform_1, window_bounds = array<i64: 59, 16>}, {transform_indices = @transform_2, window_bounds = array<i64: 8, 16>}]} {
    %c0 = arith.constant 0 : index
    %c0_0 = arith.constant 0 : index
    %0 = vector.load %arg1[%c0, %c0_0] : memref<8x32xf32, #tpu.memory_space<vmem>>, vector<8x32xf32>
    %1 = arith.mulf %0, %0 : vector<8x32xf32>
    %cst = arith.constant dense<0.000000e+00> : vector<8xf32>
    %2 = vector.multi_reduction <add>, %1, %cst [1] : vector<8x32xf32> to vector<8xf32>
    %3 = vector.shape_cast %2 : vector<8xf32> to vector<8x1xf32>
    %cst_1 = arith.constant 9.99999996E-13 : f32
    %4 = vector.broadcast %cst_1 : f32 to vector<8x1xf32>
    %5 = arith.addf %3, %4 : vector<8x1xf32>
    %6 = math.rsqrt %5 : vector<8x1xf32>
    %7 = vector.broadcast %6 : vector<8x1xf32> to vector<8x32xf32>
    %8 = arith.mulf %0, %7 : vector<8x32xf32>
    %c0_2 = arith.constant 0 : index
    %c0_3 = arith.constant 0 : index
    %9 = vector.load %arg2[%c0_2, %c0_3] : memref<59x16xf32, #tpu.memory_space<vmem>>, vector<32x4xf32>
    %c56 = arith.constant 56 : index
    %c0_4 = arith.constant 0 : index
    %10 = vector.load %arg2[%c56, %c0_4] : memref<59x16xf32, #tpu.memory_space<vmem>>, vector<1x4xf32>
    %cst_5 = arith.constant dense<0.000000e+00> : vector<8x4xf32>
    %11 = tpu.matmul %8, %9, %cst_5 {dimension_numbers = #tpu.dot_dimension_numbers<[1], [0], [0], [1], [0, 0, 1, 1], [], []>} : vector<8x32xf32>, vector<32x4xf32>, vector<8x4xf32> -> vector<8x4xf32>
    %12 = vector.broadcast %10 : vector<1x4xf32> to vector<8x4xf32>
    %13 = arith.addf %11, %12 : vector<8x4xf32>
    %14 = math.tanh %13 : vector<8x4xf32>
    %c32 = arith.constant 32 : index
    %c0_6 = arith.constant 0 : index
    %15 = vector.load %arg2[%c32, %c0_6] : memref<59x16xf32, #tpu.memory_space<vmem>>, vector<4x4xf32>
    %c57 = arith.constant 57 : index
    %c0_7 = arith.constant 0 : index
    %16 = vector.load %arg2[%c57, %c0_7] : memref<59x16xf32, #tpu.memory_space<vmem>>, vector<1x4xf32>
    %cst_8 = arith.constant dense<0.000000e+00> : vector<8x4xf32>
    %17 = tpu.matmul %14, %15, %cst_8 {dimension_numbers = #tpu.dot_dimension_numbers<[1], [0], [0], [1], [0, 0, 1, 1], [], []>} : vector<8x4xf32>, vector<4x4xf32>, vector<8x4xf32> -> vector<8x4xf32>
    %18 = vector.broadcast %16 : vector<1x4xf32> to vector<8x4xf32>
    %19 = arith.addf %17, %18 : vector<8x4xf32>
    %20 = math.tanh %19 : vector<8x4xf32>
    %c40 = arith.constant 40 : index
    %c0_9 = arith.constant 0 : index
    %21 = vector.load %arg2[%c40, %c0_9] : memref<59x16xf32, #tpu.memory_space<vmem>>, vector<4x4xf32>
    %c58 = arith.constant 58 : index
    %c0_10 = arith.constant 0 : index
    %22 = vector.load %arg2[%c58, %c0_10] : memref<59x16xf32, #tpu.memory_space<vmem>>, vector<1x4xf32>
    %cst_11 = arith.constant dense<0.000000e+00> : vector<8x4xf32>
    %23 = tpu.matmul %20, %21, %cst_11 {dimension_numbers = #tpu.dot_dimension_numbers<[1], [0], [0], [1], [0, 0, 1, 1], [], []>} : vector<8x4xf32>, vector<4x4xf32>, vector<8x4xf32> -> vector<8x4xf32>
    %24 = vector.broadcast %22 : vector<1x4xf32> to vector<8x4xf32>
    %25 = arith.addf %23, %24 : vector<8x4xf32>
    %26 = math.tanh %25 : vector<8x4xf32>
    %c48 = arith.constant 48 : index
    %c0_12 = arith.constant 0 : index
    %27 = vector.load %arg2[%c48, %c0_12] : memref<59x16xf32, #tpu.memory_space<vmem>>, vector<4x16xf32>
    %cst_13 = arith.constant dense<0.000000e+00> : vector<8x16xf32>
    %28 = tpu.matmul %26, %27, %cst_13 {dimension_numbers = #tpu.dot_dimension_numbers<[1], [0], [0], [1], [0, 0, 1, 1], [], []>} : vector<8x4xf32>, vector<4x16xf32>, vector<8x16xf32> -> vector<8x16xf32>
    %c0_14 = arith.constant 0 : index
    %c0_15 = arith.constant 0 : index
    %29 = vector.load %arg3[%c0_14, %c0_15] : memref<8x16xf32, #tpu.memory_space<vmem>>, vector<8x16xf32>
    tpu.vector_store %arg3[%c0_14, %c0_15], %28 {strides = array<i32>} : memref<8x16xf32, #tpu.memory_space<vmem>>, vector<8x16xf32>,
    return
  }
  func.func @transform_0(%arg0: i32) -> (i32, i32) {
    %c0_i32 = arith.constant 0 : i32
    %c0_i32_0 = arith.constant 0 : i32
    return %arg0, %c0_i32 : i32, i32
  }
  func.func @transform_1(%arg0: i32) -> (i32, i32) {
    %c0_i32 = arith.constant 0 : i32
    %c0_i32_0 = arith.constant 0 : i32
    %c0_i32_1 = arith.constant 0 : i32
    return %c0_i32, %c0_i32_0 : i32, i32
  }
  func.func @transform_2(%arg0: i32) -> (i32, i32) {
    %c0_i32 = arith.constant 0 : i32
    %c0_i32_0 = arith.constant 0 : i32
    return %arg0, %c0_i32 : i32, i32
  }
}

</mosaic_0001>

<llo_original>
// kernel: tpu_custom_call.1
$region0: #{tpu_custom_call.1}
  #allocation0 [shape = 'u32[]', space=smem, size = 0x4, offset = 0x4, fixed_abs, tag = 'smem constant byte address 0x4 - core index']
  #allocation1 [shape = 'u32[144,128]{1,0:T(1,128)}', space=vmem, size = 0x12000, scoped, tag = 'internal scratch']
  %s0 = inlined_call_operand.vmem [shape: f32[8,32], index: 0, kind: input, shape index: {}]
  %s1 = inlined_call_operand.vmem [shape: f32[59,16], index: 1, kind: input, shape index: {}]
  %s2 = inlined_call_operand.hbm [shape: f32[8,16], index: 2, kind: output, shape index: {}]
  %s3 = sld [smem:[#allocation0]]
  $region18: #{tpu_custom_call.1} parent=0
    _
  %s5 = ssub.s32 1, %s3
  %s6 = scalar_select 0, %s5, %s3
  $region1: #{tpu_custom_call.1} parent=0
    #allocation2 [shape = 'u8[4096]{0}', space=vmem, size = 0x1000, scoped, tag = 'output window, operand 0, single buffered']
    #allocation3 [shape = 's32[1]{0}', space=sflag, size = 0x4, scoped, tag = 'scoped memory for tpu_custom_call.1']
    %7 = vsyncpa [#allocation3], 0
    // Predicated region
    $region2: #{tpu_custom_call.1} parent=1 // pred_check
      _
    $region3: #{tpu_custom_call.1} parent=1 // pred_check_branch
      %9 = sbr.rel (0) target = $region5
    $region4: #{tpu_custom_call.1} parent=1 // pred_region
      _
    $region5: #{tpu_custom_call.1} parent=1 // pred_fallthru
      _
    // Predicated region
    $region6: #{tpu_custom_call.1} parent=1 // pred_check
      _
    $region7: #{tpu_custom_call.1} parent=1 // pred_check_branch
      %11 = sbr.rel (0) target = $region9
    $region8: #{tpu_custom_call.1} parent=1 // pred_region
      _
    $region9: #{tpu_custom_call.1} parent=1 // pred_fallthru
      _
    %v12 = vld [vmem:[%s0] sm:$0xff]
    %v13 = vmul.f32 %v12, %v12
    %vm14 = vcmask 261120
    %v15 = vsel %vm14, %v13, 0.0
    %16 = vadd.xlane.f32.xlu0 %v15
    %v17 = vpop.xlane.xlu0 %16
    %v18 = vadd.f32 %v17, 1e-12
    %v19 = vrsqrt.pop %v18
    %v20 = vmul.f32 %v12, %v19
    %v21 = vld [vmem:[%s1] sm:$0xff]
    %v22 = vld [vmem:[%s1 + $0x8] sm:$0xff]
    %v23 = vld [vmem:[%s1 + $0x10] sm:$0xff]
    %v24 = vld [vmem:[%s1 + $0x18] sm:$0xff]
    %v25 = vld [vmem:[%s1 + $0x38] sm:$0x1]
    %v26 = vlaneseq
    %v27 = vshrl.u32 %v26, 7
    %v28 = vsub.s32 0, %v27
    %v29 = vrot.slane %v25, %v28
    %v31 = vsel %vm14, %v20, 0
    %33 = vmatprep.subr.mxu0 0.0
    %34 = vmatpush1.msra.mxu0 %v21
    %35 = vmatprep.subr.mxu0 0.0
    %36 = vmatpush1.msra.mxu0 %v22
    %37 = vmatprep.subr.mxu0 0.0
    %38 = vmatpush1.msra.mxu0 %v23
    %39 = vmatprep.subr.mxu0 0.0
    %40 = vmatpush1.msra.mxu0 %v24
    %41 = vmatprep.subr.mxu0 0.0
    %42 = vmatpush1.msra.mxu0 0.0
    %43 = vmatprep.subr.mxu0 0.0
    %44 = vmatpush1.msra.mxu0 0.0
    %45 = vmatprep.subr.mxu0 0.0
    %46 = vmatpush1.msra.mxu0 0.0
    %47 = vmatprep.subr.mxu0 0.0
    %48 = vmatpush1.msra.mxu0 0.0
    %49 = vmatprep.subr.mxu0 0.0
    %50 = vmatpush1.msra.mxu0 0.0
    %51 = vmatprep.subr.mxu0 0.0
    %52 = vmatpush1.msra.mxu0 0.0
    %53 = vmatprep.subr.mxu0 0.0
    %54 = vmatpush1.msra.mxu0 0.0
    %55 = vmatprep.subr.mxu0 0.0
    %56 = vmatpush1.msra.mxu0 0.0
    %57 = vmatprep.subr.mxu0 0.0
    %58 = vmatpush1.msra.mxu0 0.0
    %59 = vmatprep.subr.mxu0 0.0
    %60 = vmatpush1.msra.mxu0 0.0
    %61 = vmatprep.subr.mxu0 0.0
    %62 = vmatpush1.msra.mxu0 0.0
    %63 = vmatprep.subr.mxu0 0.0
    %64 = vmatpush1.msra.mxu0 0.0
    %65 = vmatprep.subr.mxu0 0.0
    %66 = vmatpush1.msra.mxu0 0.0
    %67 = vmatprep.subr.mxu0 0.0
    %68 = vmatpush1.msra.mxu0 0.0
    %69 = vmatprep.subr.mxu0 0.0
    %70 = vmatpush1.msra.mxu0 0.0
    %71 = vmatprep.subr.mxu0 0.0
    %72 = vmatpush1.msra.mxu0 0.0
    %73 = vmatprep.subr.mxu0 0.0
    %74 = vmatpush1.msra.mxu0 0.0
    %75 = vmatprep.subr.mxu0 0.0
    %76 = vmatpush1.msra.mxu0 0.0
    %77 = vmatprep.subr.mxu0 0.0
    %78 = vmatpush1.msra.mxu0 0.0
    %79 = vmatprep.subr.mxu0 0.0
    %80 = vmatpush1.msra.mxu0 0.0
    %81 = vmatprep.subr.mxu0 0.0
    %82 = vmatpush1.msra.mxu0 0.0
    %83 = vmatprep.subr.mxu0 0.0
    %84 = vmatpush1.msra.mxu0 0.0
    %85 = vmatprep.subr.mxu0 0.0
    %86 = vmatpush1.msra.mxu0 0.0
    %87 = vmatprep.subr.mxu0 0.0
    %88 = vmatpush1.msra.mxu0 0.0
    %89 = vmatprep.subr.mxu0 0.0
    %90 = vmatpush1.msra.mxu0 0.0
    %91 = vmatprep.subr.mxu0 0.0
    %92 = vmatpush1.msra.mxu0 0.0
    %93 = vmatprep.subr.mxu0 0.0
    %94 = vmatpush1.msra.mxu0 0.0
    %95 = vmatprep.subr.mxu0 0.0
    %96 = vmatpush1.msra.mxu0 0.0
    %97 = vmatprep.mubr.f32.mxu0 0.0
    %98 = vmatmul.mubr.f32.gmra.mrb[0].mxu0 %v31
    %v99 = vpop.f32.mrb[0].mxu0
    %v100 = vadd.f32 %v29, %v99
    %v101 = vpop.f32.mrb[0].mxu0
    %102 = vdwg.mxu0
    %v103 = vtanh.pop %v100
    %v104 = vld [vmem:[%s1 + $0x20] sm:$0xf]
    %v105 = vld [vmem:[%s1 + $0x39] sm:$0x1]
    %v106 = vlaneseq
    %v107 = vshrl.u32 %v106, 7
    %v108 = vsub.s32 0, %v107
    %v109 = vrot.slane %v105, %v108
    %vm110 = vcmask 31744
    %v112 = vsel %vm110, %v103, 0
    %vm114 = vcmask 1043456
    %v116 = vsel %vm114, %v104, 0
    %118 = vmatprep.subr.mxu0 0.0
    %119 = vmatpush1.msra.mxu0 %v116
    %120 = vmatprep.subr.mxu0 0.0
    %121 = vmatpush1.msra.mxu0 0.0
    %122 = vmatprep.subr.mxu0 0.0
    %123 = vmatpush1.msra.mxu0 0.0
    %124 = vmatprep.subr.mxu0 0.0
    %125 = vmatpush1.msra.mxu0 0.0
    %126 = vmatprep.subr.mxu0 0.0
    %127 = vmatpush1.msra.mxu0 0.0
    %128 = vmatprep.subr.mxu0 0.0
    %129 = vmatpush1.msra.mxu0 0.0
    %130 = vmatprep.subr.mxu0 0.0
    %131 = vmatpush1.msra.mxu0 0.0
    %132 = vmatprep.subr.mxu0 0.0
    %133 = vmatpush1.msra.mxu0 0.0
    %134 = vmatprep.subr.mxu0 0.0
    %135 = vmatpush1.msra.mxu0 0.0
    %136 = vmatprep.subr.mxu0 0.0
    %137 = vmatpush1.msra.mxu0 0.0
    %138 = vmatprep.subr.mxu0 0.0
    %139 = vmatpush1.msra.mxu0 0.0
    %140 = vmatprep.subr.mxu0 0.0
    %141 = vmatpush1.msra.mxu0 0.0
    %142 = vmatprep.subr.mxu0 0.0
    %143 = vmatpush1.msra.mxu0 0.0
    %144 = vmatprep.subr.mxu0 0.0
    %145 = vmatpush1.msra.mxu0 0.0
    %146 = vmatprep.subr.mxu0 0.0
    %147 = vmatpush1.msra.mxu0 0.0
    %148 = vmatprep.subr.mxu0 0.0
    %149 = vmatpush1.msra.mxu0 0.0
    %150 = vmatprep.subr.mxu0 0.0
    %151 = vmatpush1.msra.mxu0 0.0
    %152 = vmatprep.subr.mxu0 0.0
    %153 = vmatpush1.msra.mxu0 0.0
    %154 = vmatprep.subr.mxu0 0.0
    %155 = vmatpush1.msra.mxu0 0.0
    %156 = vmatprep.subr.mxu0 0.0
    %157 = vmatpush1.msra.mxu0 0.0
    %158 = vmatprep.subr.mxu0 0.0
    %159 = vmatpush1.msra.mxu0 0.0
    %160 = vmatprep.subr.mxu0 0.0
    %161 = vmatpush1.msra.mxu0 0.0
    %162 = vmatprep.subr.mxu0 0.0
    %163 = vmatpush1.msra.mxu0 0.0
    %164 = vmatprep.subr.mxu0 0.0
    %165 = vmatpush1.msra.mxu0 0.0
    %166 = vmatprep.subr.mxu0 0.0
    %167 = vmatpush1.msra.mxu0 0.0
    %168 = vmatprep.subr.mxu0 0.0
    %169 = vmatpush1.msra.mxu0 0.0
    %170 = vmatprep.subr.mxu0 0.0
    %171 = vmatpush1.msra.mxu0 0.0
    %172 = vmatprep.subr.mxu0 0.0
    %173 = vmatpush1.msra.mxu0 0.0
    %174 = vmatprep.subr.mxu0 0.0
    %175 = vmatpush1.msra.mxu0 0.0
    %176 = vmatprep.subr.mxu0 0.0
    %177 = vmatpush1.msra.mxu0 0.0
    %178 = vmatprep.subr.mxu0 0.0
    %179 = vmatpush1.msra.mxu0 0.0
    %180 = vmatprep.subr.mxu0 0.0
    %181 = vmatpush1.msra.mxu0 0.0
    %182 = vmatprep.mubr.f32.mxu0 0.0
    %183 = vmatmul.mubr.f32.gmra.mrb[0].mxu0 %v112
    %v184 = vpop.f32.mrb[0].mxu0
    %v185 = vadd.f32 %v109, %v184
    %v186 = vpop.f32.mrb[0].mxu0
    %187 = vdwg.mxu0
    %v188 = vtanh.pop %v185
    %v189 = vld [vmem:[%s1 + $0x28] sm:$0xf]
    %v190 = vld [vmem:[%s1 + $0x3a] sm:$0x1]
    %v191 = vlaneseq
    %v192 = vshrl.u32 %v191, 7
    %v193 = vsub.s32 0, %v192
    %v194 = vrot.slane %v190, %v193
    %v196 = vsel %vm110, %v188, 0
    %v199 = vsel %vm114, %v189, 0
    %201 = vmatprep.subr.mxu0 0.0
    %202 = vmatpush1.msra.mxu0 %v199
    %203 = vmatprep.subr.mxu0 0.0
    %204 = vmatpush1.msra.mxu0 0.0
    %205 = vmatprep.subr.mxu0 0.0
    %206 = vmatpush1.msra.mxu0 0.0
    %207 = vmatprep.subr.mxu0 0.0
    %208 = vmatpush1.msra.mxu0 0.0
    %209 = vmatprep.subr.mxu0 0.0
    %210 = vmatpush1.msra.mxu0 0.0
    %211 = vmatprep.subr.mxu0 0.0
    %212 = vmatpush1.msra.mxu0 0.0
    %213 = vmatprep.subr.mxu0 0.0
    %214 = vmatpush1.msra.mxu0 0.0
    %215 = vmatprep.subr.mxu0 0.0
    %216 = vmatpush1.msra.mxu0 0.0
    %217 = vmatprep.subr.mxu0 0.0
    %218 = vmatpush1.msra.mxu0 0.0
    %219 = vmatprep.subr.mxu0 0.0
    %220 = vmatpush1.msra.mxu0 0.0
    %221 = vmatprep.subr.mxu0 0.0
    %222 = vmatpush1.msra.mxu0 0.0
    %223 = vmatprep.subr.mxu0 0.0
    %224 = vmatpush1.msra.mxu0 0.0
    %225 = vmatprep.subr.mxu0 0.0
    %226 = vmatpush1.msra.mxu0 0.0
    %227 = vmatprep.subr.mxu0 0.0
    %228 = vmatpush1.msra.mxu0 0.0
    %229 = vmatprep.subr.mxu0 0.0
    %230 = vmatpush1.msra.mxu0 0.0
    %231 = vmatprep.subr.mxu0 0.0
    %232 = vmatpush1.msra.mxu0 0.0
    %233 = vmatprep.subr.mxu0 0.0
    %234 = vmatpush1.msra.mxu0 0.0
    %235 = vmatprep.subr.mxu0 0.0
    %236 = vmatpush1.msra.mxu0 0.0
    %237 = vmatprep.subr.mxu0 0.0
    %238 = vmatpush1.msra.mxu0 0.0
    %239 = vmatprep.subr.mxu0 0.0
    %240 = vmatpush1.msra.mxu0 0.0
    %241 = vmatprep.subr.mxu0 0.0
    %242 = vmatpush1.msra.mxu0 0.0
    %243 = vmatprep.subr.mxu0 0.0
    %244 = vmatpush1.msra.mxu0 0.0
    %245 = vmatprep.subr.mxu0 0.0
    %246 = vmatpush1.msra.mxu0 0.0
    %247 = vmatprep.subr.mxu0 0.0
    %248 = vmatpush1.msra.mxu0 0.0
    %249 = vmatprep.subr.mxu0 0.0
    %250 = vmatpush1.msra.mxu0 0.0
    %251 = vmatprep.subr.mxu0 0.0
    %252 = vmatpush1.msra.mxu0 0.0
    %253 = vmatprep.subr.mxu0 0.0
    %254 = vmatpush1.msra.mxu0 0.0
    %255 = vmatprep.subr.mxu0 0.0
    %256 = vmatpush1.msra.mxu0 0.0
    %257 = vmatprep.subr.mxu0 0.0
    %258 = vmatpush1.msra.mxu0 0.0
    %259 = vmatprep.subr.mxu0 0.0
    %260 = vmatpush1.msra.mxu0 0.0
    %261 = vmatprep.subr.mxu0 0.0
    %262 = vmatpush1.msra.mxu0 0.0
    %263 = vmatprep.subr.mxu0 0.0
    %264 = vmatpush1.msra.mxu0 0.0
    %265 = vmatprep.mubr.f32.mxu0 0.0
    %266 = vmatmul.mubr.f32.gmra.mrb[0].mxu0 %v196
    %v267 = vpop.f32.mrb[0].mxu0
    %v268 = vadd.f32 %v194, %v267
    %v269 = vpop.f32.mrb[0].mxu0
    %270 = vdwg.mxu0
    %v271 = vtanh.pop %v268
    %v272 = vld [vmem:[%s1 + $0x30] sm:$0xf]
    %v274 = vsel %vm110, %v271, 0
    %v277 = vsel %vm114, %v272, 0
    %279 = vmatprep.subr.mxu0 0.0
    %280 = vmatpush1.msra.mxu0 %v277
    %281 = vmatprep.subr.mxu0 0.0
    %282 = vmatpush1.msra.mxu0 0.0
    %283 = vmatprep.subr.mxu0 0.0
    %284 = vmatpush1.msra.mxu0 0.0
    %285 = vmatprep.subr.mxu0 0.0
    %286 = vmatpush1.msra.mxu0 0.0
    %287 = vmatprep.subr.mxu0 0.0
    %288 = vmatpush1.msra.mxu0 0.0
    %289 = vmatprep.subr.mxu0 0.0
    %290 = vmatpush1.msra.mxu0 0.0
    %291 = vmatprep.subr.mxu0 0.0
    %292 = vmatpush1.msra.mxu0 0.0
    %293 = vmatprep.subr.mxu0 0.0
    %294 = vmatpush1.msra.mxu0 0.0
    %295 = vmatprep.subr.mxu0 0.0
    %296 = vmatpush1.msra.mxu0 0.0
    %297 = vmatprep.subr.mxu0 0.0
    %298 = vmatpush1.msra.mxu0 0.0
    %299 = vmatprep.subr.mxu0 0.0
    %300 = vmatpush1.msra.mxu0 0.0
    %301 = vmatprep.subr.mxu0 0.0
    %302 = vmatpush1.msra.mxu0 0.0
    %303 = vmatprep.subr.mxu0 0.0
    %304 = vmatpush1.msra.mxu0 0.0
    %305 = vmatprep.subr.mxu0 0.0
    %306 = vmatpush1.msra.mxu0 0.0
    %307 = vmatprep.subr.mxu0 0.0
    %308 = vmatpush1.msra.mxu0 0.0
    %309 = vmatprep.subr.mxu0 0.0
    %310 = vmatpush1.msra.mxu0 0.0
    %311 = vmatprep.subr.mxu0 0.0
    %312 = vmatpush1.msra.mxu0 0.0
    %313 = vmatprep.subr.mxu0 0.0
    %314 = vmatpush1.msra.mxu0 0.0
    %315 = vmatprep.subr.mxu0 0.0
    %316 = vmatpush1.msra.mxu0 0.0
    %317 = vmatprep.subr.mxu0 0.0
    %318 = vmatpush1.msra.mxu0 0.0
    %319 = vmatprep.subr.mxu0 0.0
    %320 = vmatpush1.msra.mxu0 0.0
    %321 = vmatprep.subr.mxu0 0.0
    %322 = vmatpush1.msra.mxu0 0.0
    %323 = vmatprep.subr.mxu0 0.0
    %324 = vmatpush1.msra.mxu0 0.0
    %325 = vmatprep.subr.mxu0 0.0
    %326 = vmatpush1.msra.mxu0 0.0
    %327 = vmatprep.subr.mxu0 0.0
    %328 = vmatpush1.msra.mxu0 0.0
    %329 = vmatprep.subr.mxu0 0.0
    %330 = vmatpush1.msra.mxu0 0.0
    %331 = vmatprep.subr.mxu0 0.0
    %332 = vmatpush1.msra.mxu0 0.0
    %333 = vmatprep.subr.mxu0 0.0
    %334 = vmatpush1.msra.mxu0 0.0
    %335 = vmatprep.subr.mxu0 0.0
    %336 = vmatpush1.msra.mxu0 0.0
    %337 = vmatprep.subr.mxu0 0.0
    %338 = vmatpush1.msra.mxu0 0.0
    %339 = vmatprep.subr.mxu0 0.0
    %340 = vmatpush1.msra.mxu0 0.0
    %341 = vmatprep.subr.mxu0 0.0
    %342 = vmatpush1.msra.mxu0 0.0
    %343 = vmatprep.mubr.f32.mxu0 0.0
    %344 = vmatmul.mubr.f32.gmra.mrb[0].mxu0 %v274
    %v345 = vpop.f32.mrb[0].mxu0
    %v346 = vadd.f32 0.0, %v345
    %v347 = vpop.f32.mrb[0].mxu0
    %348 = vdwg.mxu0
    %vm349 = vcmask 130048
    %350 = vst.msk [vmem:[#allocation2] sm:$0xff] %vm349, %v346
    // Predicated region
    $region10: #{tpu_custom_call.1} parent=1 // pred_check
      _
    $region11: #{tpu_custom_call.1} parent=1 // pred_check_branch
      %352 = sbr.rel (0) target = $region13
    $region12: #{tpu_custom_call.1} parent=1 // pred_region
      %s354 = ssub.s32 128, 128
      %355 = vsyncadd [#allocation3], %s354
      %s357 = sshll.u32 [#allocation2], 4
      %s358 = int_to_ptr.vmem [resolvable:$true] %s357
      %360 = dma.vmem_to_hbm [thread:$0]  %s358, 128, %s2, [#allocation3]
    $region13: #{tpu_custom_call.1} parent=1 // pred_fallthru
      _
    // Predicated region
    $region14: #{tpu_custom_call.1} parent=1 // pred_check
      _
    $region15: #{tpu_custom_call.1} parent=1 // pred_check_branch
      %362 = sbr.rel (0) target = $region17
    $region16: #{tpu_custom_call.1} parent=1 // pred_region
      %363 = dma.done [#allocation3], 128
    $region17: #{tpu_custom_call.1} parent=1 // pred_fallthru
      _
    %364 = vsyncpa [#allocation3], 1

</llo_original>
